<compile_context>
chip_gen: v5e
topology: v5e:2x2
jax: 0.10.0
libtpu: 0.0.40
codegen_flags: <defaults>
</compile_context>

<pallas_src>
import functools

import jax
import jax.numpy as jnp
from jax.experimental import pallas as pl
from jax.experimental.pallas import tpu as pltpu


# ---------------------------------------------------------------------------
# Pallas kernel:  acc += W_eff^T @ P^T ;  out = leaky_relu(acc + shift) at last K step
# ---------------------------------------------------------------------------
def _fused_deconv_bn_lrelu_kernel(w_ref, shift_ref, p_ref, o_ref, acc_ref,
                                  *, negative_slope):
    # w_ref:     (CO4, TK)   bf16  BN-scale-folded subpixel weight (transposed), K tile
    # shift_ref: (CO4, 1)    f32   BN shift (beta - mean*scale), tiled per parity
    # p_ref:     (TK, TM)    bf16  patches^T tile (pixels on the lane axis)
    # o_ref:     (CO4, TM)   f32   lane-dense output tile (resident across K axis)
    # acc_ref:   (CO4, TM)   f32   VMEM accumulator scratch
    kk = pl.program_id(1)

    @pl.when(kk == 0)
    def _():
        acc_ref[...] = jnp.zeros_like(acc_ref)

    acc_ref[...] += jnp.dot(w_ref[...], p_ref[...],
                            preferred_element_type=jnp.float32)

    @pl.when(kk == pl.num_programs(1) - 1)
    def _():
        y = acc_ref[...] + shift_ref[...]
        o_ref[...] = jnp.where(y > 0, y, negative_slope * y).astype(o_ref.dtype)


# ---------------------------------------------------------------------------
# Subpixel decomposition helpers (wrapper-side, cheap XLA glue)
# ---------------------------------------------------------------------------
def _subpixel_tap_range(k, stride, pad_lo):
    """Range of input-row offsets (taps) used by any output parity."""
    dys = [(e + di - pad_lo) // stride
           for e in range(stride) for di in range(k)
           if (e + di - pad_lo) % stride == 0]
    assert dys, "no valid taps for this (kernel, stride, padding) configuration"
    return min(dys), max(dys)


def _build_subpixel_weight(w_t, gamma, beta, running_mean, running_var,
                           *, stride, padding, eps):
    """ConvTranspose weight -> (s*s*C_out, T*T*C_in) matrix with BN scale folded in."""
    c_in, c_out, k, _ = w_t.shape
    s = stride
    pad_lo = k - 1 - padding
    d_min, d_max = _subpixel_tap_range(k, s, pad_lo)
    t = d_max - d_min + 1

    scale = (gamma / jnp.sqrt(running_var + eps)).astype(jnp.float32)   # (c_out,)
    shift = (beta - running_mean * scale).astype(jnp.float32)           # (c_out,)

    w32 = w_t.astype(jnp.float32)
    wb = jnp.zeros((t, t, c_in, s, s, c_out), jnp.float32)
    for ey in range(s):
        for ty in range(t):
            di = s * (d_min + ty) + pad_lo - ey
            if not (0 <= di < k):
                continue
            ki = k - 1 - di                       # kernel flip (transposed conv)
            for ex in range(s):
                for tx in range(t):
                    dj = s * (d_min + tx) + pad_lo - ex
                    if not (0 <= dj < k):
                        continue
                    kj = k - 1 - dj
                    wb = wb.at[ty, tx, :, ey, ex, :].set(w32[:, :, ki, kj])

    wb = wb * scale                               # fold BN scale into the weights
    w_mat_t = wb.reshape(t * t * c_in, s * s * c_out).T    # (s*s*C_out, T*T*C_in)
    shift_t = jnp.tile(shift, s * s).reshape(s * s * c_out, 1)
    return w_mat_t, shift_t, d_min, d_max


def _build_patches_t(x_nchw, *, k, stride, padding, output_padding, d_min, d_max):
    """(T*T*C_in, N*Hb*Wb) bf16 patches^T from the ORIGINAL (non-dilated) input."""
    n, c_in, h, w = x_nchw.shape
    s = stride
    t = d_max - d_min + 1
    ho = (h - 1) * s - 2 * padding + k + output_padding
    wo = (w - 1) * s - 2 * padding + k + output_padding
    hb = pl.cdiv(ho, s)
    wb = pl.cdiv(wo, s)

    pad_t = max(0, -d_min)
    pad_b = max(0, hb - 1 + d_max - (h - 1))
    pad_l = max(0, -d_min)
    pad_r = max(0, wb - 1 + d_max - (w - 1))
    xp = jnp.pad(x_nchw.astype(jnp.bfloat16),
                 ((0, 0), (0, 0), (pad_t, pad_b), (pad_l, pad_r)))

    views = []
    for ty in range(t):
        r0 = d_min + ty + pad_t
        for tx in range(t):
            c0 = d_min + tx + pad_l
            views.append(xp[:, :, r0:r0 + hb, c0:c0 + wb])
    p = jnp.stack(views, axis=0)                  # (T*T, N, C_in, Hb, Wb)
    p = p.transpose(0, 2, 1, 3, 4).reshape(t * t * c_in, n * hb * wb)
    return p, ho, wo, hb, wb


# ---------------------------------------------------------------------------
# Forward pass (target_size=None path of the module)
# ---------------------------------------------------------------------------
def conv_transpose_bn_relu(x_nchw, w_t, gamma, beta, running_mean, running_var,
                           *, stride=2, padding=1, output_padding=1,
                           eps=1e-5, negative_slope=0.2, tile_m=512, tile_k_max=2048):
    n, c_in, h, w = x_nchw.shape
    c_in_w, c_out, k, k2 = w_t.shape
    assert c_in == c_in_w and k == k2 and k % 2 == 1
    s = stride

    # ---- wrapper glue: subpixel weight (BN folded) + compact patches^T ----
    w_mat_t, shift_t, d_min, d_max = _build_subpixel_weight(
        w_t, gamma, beta, running_mean, running_var,
        stride=s, padding=padding, eps=eps)
    patches_t, ho, wo, hb, wb = _build_patches_t(
        x_nchw, k=k, stride=s, padding=padding, output_padding=output_padding,
        d_min=d_min, d_max=d_max)

    co4, kd = w_mat_t.shape
    m = patches_t.shape[1]                        # N * Hb * Wb base pixels

    # ---- pixel (M) tiling: lane-dense tiles, >=2 grid steps when possible ----
    tile_m = max(128, (tile_m // 128) * 128)
    m128 = pl.cdiv(m, 128) * 128
    tm = min(tile_m, m128)
    if m128 // tm < 2 and m128 >= 256:
        tm = max(128, ((m128 // 2) // 128) * 128)
    m_pad = pl.cdiv(m, tm) * tm

    # ---- contraction (K) tiling: resident weight for typical C_in, streamed K
    #      blocks + VMEM accumulator for very large C_in ----
    if kd <= tile_k_max:
        tk, kd_pad = kd, kd
    else:
        tk = tile_k_max                           # multiple of 128
        kd_pad = pl.cdiv(kd, tk) * tk

    w_bf = w_mat_t.astype(jnp.bfloat16)
    if kd_pad != kd:
        w_bf = jnp.pad(w_bf, ((0, 0), (0, kd_pad - kd)))
    if kd_pad != kd or m_pad != m:
        patches_t = jnp.pad(patches_t, ((0, kd_pad - kd), (0, m_pad - m)))

    # VMEM budget: double-buffered weight/patch/output tiles, accumulator, shift.
    est = (2 * (co4 * tk * 2)        # weight K tiles (bf16, double-buffered)
           + 2 * (tk * tm * 2)       # patch tiles  (bf16, double-buffered)
           + 2 * (co4 * tm * 4)      # output tiles (f32, double-buffered)
           + co4 * tm * 4            # accumulator scratch
           + co4 * 128 * 4)          # BN shift (lane-padded)
    vmem_limit = int(min(48 << 20, max(8 << 20, 2 * est)))

    kernel = functools.partial(_fused_deconv_bn_lrelu_kernel,
                               negative_slope=negative_slope)
    out_t = pl.pallas_call(
        kernel,
        out_shape=jax.ShapeDtypeStruct((co4, m_pad), jnp.float32),
        grid_spec=pltpu.PrefetchScalarGridSpec(
            num_scalar_prefetch=0,
            grid=(m_pad // tm, kd_pad // tk),
            in_specs=[
                pl.BlockSpec((co4, tk), lambda i, kk: (0, kk)),   # weight K tile
                pl.BlockSpec((co4, 1), lambda i, kk: (0, 0)),     # BN shift (resident)
                pl.BlockSpec((tk, tm), lambda i, kk: (kk, i)),    # patches^T tile
            ],
            out_specs=pl.BlockSpec((co4, tm), lambda i, kk: (0, i)),
            scratch_shapes=[pltpu.VMEM((co4, tm), jnp.float32)],
        ),
        compiler_params=pltpu.CompilerParams(
            dimension_semantics=("parallel", "arbitrary"),
            vmem_limit_bytes=vmem_limit),
    )(w_bf, shift_t, patches_t)

    # ---- depth-to-space unshuffle of the parity columns + back to NCHW ----
    res = out_t[:, :m].reshape(s, s, c_out, n, hb, wb)     # (ey, ex, co, n, i, j)
    res = res.transpose(3, 2, 4, 0, 5, 1)                  # (n, co, i, ey, j, ex)
    res = res.reshape(n, c_out, s * hb, s * wb)
    return res[:, :, :ho, :wo]


# ---------------------------------------------------------------------------
# Plain-JAX references (PyTorch semantics) for the sanity check
# ---------------------------------------------------------------------------
def _reference(x, w_t, gamma, beta, running_mean, running_var,
               *, stride=2, padding=1, output_padding=1, eps=1e-5,
               negative_slope=0.2, match_kernel_bf16=False):
    k = w_t.shape[2]
    scale = gamma / jnp.sqrt(running_var + eps)
    shift = beta - running_mean * scale
    w_conv = jnp.transpose(w_t[:, :, ::-1, ::-1], (1, 0, 2, 3)).astype(jnp.float32)
    xx = x.astype(jnp.float32)
    if match_kernel_bf16:
        w_conv = (w_conv * scale[:, None, None, None]).astype(jnp.bfloat16).astype(jnp.float32)
        xx = xx.astype(jnp.bfloat16).astype(jnp.float32)
    pad = (k - 1 - padding, k - 1 - padding + output_padding)
    y = jax.lax.conv_general_dilated(
        xx, w_conv, window_strides=(1, 1), padding=[pad, pad],
        lhs_dilation=(stride, stride),
        dimension_numbers=("NCHW", "OIHW", "NCHW"),
        preferred_element_type=jnp.float32)
    if match_kernel_bf16:
        y = y + shift[None, :, None, None]
    else:
        y = y * scale[None, :, None, None] + shift[None, :, None, None]
    return jnp.where(y > 0, y, negative_slope * y)


if __name__ == "__main__":
    # Small shapes consistent with the module: ch_in=4, ch_out=8, kernel=3, stride=2.
    N, C_IN, C_OUT, H, W, K = 2, 4, 8, 16, 16, 3

    key = jax.random.PRNGKey(0)
    k_x, k_w, k_g, k_b, k_m, k_v = jax.random.split(key, 6)
    x = jax.random.normal(k_x, (N, C_IN, H, W), jnp.float32)
    # ConvTranspose2d weight shape: (C_in, C_out, K, K); bias=False because bn=True.
    w_t = jax.random.normal(k_w, (C_IN, C_OUT, K, K), jnp.float32) * 0.1
    gamma = jax.random.normal(k_g, (C_OUT,), jnp.float32) * 0.1 + 1.0
    beta = jax.random.normal(k_b, (C_OUT,), jnp.float32) * 0.1
    running_mean = jax.random.normal(k_m, (C_OUT,), jnp.float32) * 0.1
    running_var = jax.random.uniform(k_v, (C_OUT,), jnp.float32, 0.5, 1.5)

    out = conv_transpose_bn_relu(x, w_t, gamma, beta, running_mean, running_var)
    out = jax.block_until_ready(out)
    assert out.shape == (N, C_OUT, 2 * H, 2 * W), out.shape

    # Tight check vs a reference using the same bf16-rounded operands (structure check).
    ref_q = _reference(x, w_t, gamma, beta, running_mean, running_var,
                       match_kernel_bf16=True)
    assert jnp.allclose(out, ref_q, atol=2e-3, rtol=2e-3), \
        float(jnp.max(jnp.abs(out - ref_q)))

    # Loose check vs the pure-f32 PyTorch-semantics reference (bf16 operand drift only).
    ref_f = _reference(x, w_t, gamma, beta, running_mean, running_var)
    assert jnp.allclose(out, ref_f, atol=5e-2, rtol=5e-2), \
        float(jnp.max(jnp.abs(out - ref_f)))

    print("KERNEL_OK")
</pallas_src>

<mosaic_0001>
module attributes {stable_mosaic.version = 11 : i64} {
  func.func @_fused_deconv_bn_lrelu_kernel(%arg0: i32, %arg1: i32, %arg2: memref<32x16xbf16, #tpu.memory_space<vmem>>, %arg3: memref<32x1xf32, #tpu.memory_space<vmem>>, %arg4: memref<16x256xbf16, #tpu.memory_space<vmem>>, %arg5: memref<32x256xf32, #tpu.memory_space<vmem>>, %arg6: memref<32x256xf32, #tpu.memory_space<vmem>>) attributes {dimension_semantics = [#tpu.dimension_semantics<parallel>, #tpu.dimension_semantics<arbitrary>], iteration_bounds = array<i64: 2, 1>, scalar_prefetch = 0 : i64, scratch_operands = 1 : i64, tpu.core_type = #tpu.core_type<tc>, window_params = [{transform_indices = @transform_0, window_bounds = array<i64: 32, 16>}, {pipeline_mode = #tpu.pipeline_mode<synchronous>, transform_indices = @transform_1, window_bounds = array<i64: 32, 1>}, {transform_indices = @transform_2, window_bounds = array<i64: 16, 256>}, {transform_indices = @transform_3, window_bounds = array<i64: 32, 256>}]} {
    %c0_i32 = arith.constant 0 : i32
    %0 = arith.cmpi eq, %arg1, %c0_i32 : i32
    %1 = arith.extui %0 : i1 to i32
    %c0_i32_0 = arith.constant 0 : i32
    %2 = arith.cmpi ne, %1, %c0_i32_0 : i32
    scf.if %2 {
      %cst_10 = arith.constant 0.000000e+00 : f32
      %12 = vector.broadcast %cst_10 : f32 to vector<32x256xf32>
      %c0_11 = arith.constant 0 : index
      %c0_12 = arith.constant 0 : index
      %13 = vector.load %arg6[%c0_11, %c0_12] : memref<32x256xf32, #tpu.memory_space<vmem>>, vector<32x256xf32>
      tpu.vector_store %arg6[%c0_11, %c0_12], %12 {strides = array<i32>} : memref<32x256xf32, #tpu.memory_space<vmem>>, vector<32x256xf32>,
    } else {
    }
    %c0 = arith.constant 0 : index
    %c0_1 = arith.constant 0 : index
    %3 = vector.load %arg6[%c0, %c0_1] : memref<32x256xf32, #tpu.memory_space<vmem>>, vector<32x256xf32>
    %c0_2 = arith.constant 0 : index
    %c0_3 = arith.constant 0 : index
    %4 = vector.load %arg2[%c0_2, %c0_3] : memref<32x16xbf16, #tpu.memory_space<vmem>>, vector<32x16xbf16>
    %c0_4 = arith.constant 0 : index
    %c0_5 = arith.constant 0 : index
    %5 = vector.load %arg4[%c0_4, %c0_5] : memref<16x256xbf16, #tpu.memory_space<vmem>>, vector<16x256xbf16>
    %cst = arith.constant dense<0.000000e+00> : vector<32x256xf32>
    %6 = tpu.matmul %4, %5, %cst {dimension_numbers = #tpu.dot_dimension_numbers<[1], [0], [0], [1], [0, 0, 1, 1], [], []>} : vector<32x16xbf16>, vector<16x256xbf16>, vector<32x256xf32> -> vector<32x256xf32>
    %7 = arith.addf %3, %6 : vector<32x256xf32>
    %c0_6 = arith.constant 0 : index
    %c0_7 = arith.constant 0 : index
    %8 = vector.load %arg6[%c0_6, %c0_7] : memref<32x256xf32, #tpu.memory_space<vmem>>, vector<32x256xf32>
    tpu.vector_store %arg6[%c0_6, %c0_7], %7 {strides = array<i32>} : memref<32x256xf32, #tpu.memory_space<vmem>>, vector<32x256xf32>,
    %c0_i32_8 = arith.constant 0 : i32
    %9 = arith.cmpi eq, %arg1, %c0_i32_8 : i32
    %10 = arith.extui %9 : i1 to i32
    %c0_i32_9 = arith.constant 0 : i32
    %11 = arith.cmpi ne, %10, %c0_i32_9 : i32
    scf.if %11 {
      %c0_10 = arith.constant 0 : index
      %c0_11 = arith.constant 0 : index
      %12 = vector.load %arg6[%c0_10, %c0_11] : memref<32x256xf32, #tpu.memory_space<vmem>>, vector<32x256xf32>
      %c0_12 = arith.constant 0 : index
      %c0_13 = arith.constant 0 : index
      %13 = vector.load %arg3[%c0_12, %c0_13] : memref<32x1xf32, #tpu.memory_space<vmem>>, vector<32x1xf32>
      %14 = vector.broadcast %13 : vector<32x1xf32> to vector<32x256xf32>
      %15 = arith.addf %12, %14 : vector<32x256xf32>
      %cst_14 = arith.constant 0.000000e+00 : f32
      %16 = vector.broadcast %cst_14 : f32 to vector<32x256xf32>
      %17 = arith.cmpf ogt, %15, %16 : vector<32x256xf32>
      %cst_15 = arith.constant 2.000000e-01 : f32
      %18 = vector.broadcast %cst_15 : f32 to vector<32x256xf32>
      %19 = arith.mulf %18, %15 : vector<32x256xf32>
      %20 = arith.select %17, %15, %19 : vector<32x256xi1>, vector<32x256xf32>
      %c0_16 = arith.constant 0 : index
      %c0_17 = arith.constant 0 : index
      %21 = vector.load %arg5[%c0_16, %c0_17] : memref<32x256xf32, #tpu.memory_space<vmem>>, vector<32x256xf32>
      tpu.vector_store %arg5[%c0_16, %c0_17], %20 {strides = array<i32>} : memref<32x256xf32, #tpu.memory_space<vmem>>, vector<32x256xf32>,
    } else {
    }
    return
  }
  func.func @transform_0(%arg0: i32, %arg1: i32) -> (i32, i32) {
    %c0_i32 = arith.constant 0 : i32
    %c0_i32_0 = arith.constant 0 : i32
    return %c0_i32, %arg1 : i32, i32
  }
  func.func @transform_1(%arg0: i32, %arg1: i32) -> (i32, i32) {
    %c0_i32 = arith.constant 0 : i32
    %c0_i32_0 = arith.constant 0 : i32
    %c0_i32_1 = arith.constant 0 : i32
    return %c0_i32, %c0_i32_0 : i32, i32
  }
  func.func @transform_2(%arg0: i32, %arg1: i32) -> (i32, i32) {
    %c0_i32 = arith.constant 0 : i32
    return %arg1, %arg0 : i32, i32
  }
  func.func @transform_3(%arg0: i32, %arg1: i32) -> (i32, i32) {
    %c0_i32 = arith.constant 0 : i32
    %c0_i32_0 = arith.constant 0 : i32
    return %c0_i32, %arg0 : i32, i32
  }
}

</mosaic_0001>

<llo_original>
// kernel: tpu_custom_call.1
$region0: #{tpu_custom_call.1}
  #allocation0 [shape = 'u32[]', space=smem, size = 0x4, offset = 0x4, fixed_abs, tag = 'smem constant byte address 0x4 - core index']
  #allocation1 [shape = 'u32[72,128]{1,0:T(1,128)}', space=vmem, size = 0x9000, scoped, tag = 'internal scratch']
  #allocation2 [shape = 'f32[32,256]{1,0:T(8,128)}', space=vmem, size = 0x8000, scoped, tag = 'scratch operand']
  %s0 = inlined_call_operand.vmem [shape: bf16[32,16], index: 0, kind: input, shape index: {}]
  %s1 = inlined_call_operand.vmem [shape: f32[32,1], index: 1, kind: input, shape index: {}]
  %s2 = inlined_call_operand.vmem [shape: bf16[16,512], index: 2, kind: input, shape index: {}]
  %s3 = inlined_call_operand.hbm [shape: f32[32,512], index: 3, kind: output, shape index: {}]
  %s4 = sld [smem:[#allocation0]]
  $region91: #{tpu_custom_call.1} parent=0
    _
  %s6 = ssub.s32 1, %s4
  %s7 = scalar_select 0, %s6, %s4
  $region1: #{tpu_custom_call.1} parent=0
    #allocation3 [shape = 'u8[16384]{0}', space=vmem, size = 0x4000, scoped, tag = 'input window, operand 2']
    #allocation4 [shape = 'u8[65536]{0}', space=vmem, size = 0x10000, scoped, tag = 'output window, operand 0']
    #allocation5 [shape = 's32[2]{0}', space=sflag, size = 0x8, scoped, tag = 'scoped memory for tpu_custom_call.1']
    %8 = vsyncpa [#allocation5], 0
    %s9 = scalar_lea.sflag [#allocation5], 1
    %10 = vsyncpa %s9, 0
    loop: start=0, step=1, limit=4
    $region2: #{tpu_custom_call.1} parent=1 // loop_pre_header
      _
    $region3: #{tpu_custom_call.1} parent=1 // loop_header
      %s12 = sphi 0, %s16
      %p13 = scmp.ge.s32.totalorder %s12, 4
      %s19 = sphi 0, %s31
      %s20 = sphi 0, %s27
      %s21 = sphi 0, %s19
      %s22 = sphi 0, %s20
      %s23 = sphi 0, %s21
      %s24 = sphi 0, %s22
      %s34 = sphi 0, %s36
      %s37 = sphi 0, %s34
      %s38 = sphi 0, %s37
      %s54 = sphi 0, %s38
      %s58 = sphi 0, %s58
      %s60 = sphi 0, %s58
      %s61 = sphi 0, %s60
      %s75 = sphi 0, %s61
      %s83 = sphi 0, %s85
      %s86 = sphi 0, %s83
      %s87 = sphi 0, %s86
      %s103 = sphi 0, %s87
      %s109 = sphi 0, %s111
      %s112 = sphi 0, %s109
      %s113 = sphi 0, %s112
      %s129 = sphi 0, %s113
    $region4: #{tpu_custom_call.1} parent=1 // loop_header_branch
      %15 = sbr.rel (%p13) target = $region8
    $region5: #{tpu_custom_call.1} parent=1 // loop_body
      %s17 = ssub.s32 %s12, 1
      %s18 = ssub.s32 %s12, 2
      %s25 = sadd.s32 1, %s20
      %p26 = scmp.ge.s32.totalorder %s25, 1
      %s27 = scalar_select %p26, 0, %s25
      %s28 = sadd.s32 1, %s19
      %s29 = scalar_select %p26, %s28, %s19
      %p30 = scmp.ge.s32.totalorder %s29, 2
      %s31 = scalar_select %p30, 0, %s29
      %s32 = ssub.s32 %s20, %s27
      %p33 = scmp.eq.s32.totalorder %s32, 0
      %s35 = sadd.s32 %s34, 1
      %s36 = scalar_select %p33, %s34, %s35
      %p39 = pneg %p33
      %p40 = scmp.eq.s32.totalorder %s12, 1
      %p41 = por %p39, %p40
      %p42 = scmp.ne.s32.totalorder %s34, %s37
      %p43 = scmp.eq.s32.totalorder %s12, 0
      %p44 = por %p42, %p43
      %p45 = scmp.ne.s32.totalorder %s34, %s37
      %p46 = scmp.eq.s32.totalorder %s17, 1
      %p47 = por %p45, %p46
      %p48 = scmp.ne.s32.totalorder %s37, %s38
      %p49 = scmp.eq.s32.totalorder %s17, 0
      %p50 = por %p48, %p49
      %p51 = scmp.ne.s32.totalorder %s37, %s38
      %p52 = scmp.eq.s32.totalorder %s18, 1
      %p53 = por %p51, %p52
      %p55 = scmp.ne.s32.totalorder %s38, %s54
      %p56 = scmp.eq.s32.totalorder %s18, 0
      %p57 = por %p55, %p56
      %s59 = sadd.s32 %s58, 1
      %p62 = scmp.eq.s32.totalorder %s12, 1
      %p63 = scmp.ne.s32.totalorder %s58, %s60
      %p64 = scmp.eq.s32.totalorder %s12, 0
      %p65 = por %p63, %p64
      %p66 = scmp.ne.s32.totalorder %s58, %s60
      %p67 = scmp.eq.s32.totalorder %s17, 1
      %p68 = por %p66, %p67
      %p69 = scmp.ne.s32.totalorder %s60, %s61
      %p70 = scmp.eq.s32.totalorder %s17, 0
      %p71 = por %p69, %p70
      %p72 = scmp.ne.s32.totalorder %s60, %s61
      %p73 = scmp.eq.s32.totalorder %s18, 1
      %p74 = por %p72, %p73
      %p76 = scmp.ne.s32.totalorder %s61, %s75
      %p77 = scmp.eq.s32.totalorder %s18, 0
      %p78 = por %p76, %p77
      %s79 = ssub.s32 %s20, %s27
      %s80 = ssub.s32 %s19, %s31
      %s81 = sor.u32 %s79, %s80
      %p82 = scmp.eq.s32.totalorder %s81, 0
      %s84 = sadd.s32 %s83, 1
      %s85 = scalar_select %p82, %s83, %s84
      %p88 = pneg %p82
      %p89 = scmp.eq.s32.totalorder %s12, 1
      %p90 = por %p88, %p89
      %p91 = scmp.ne.s32.totalorder %s83, %s86
      %p92 = scmp.eq.s32.totalorder %s12, 0
      %p93 = por %p91, %p92
      %p94 = scmp.ne.s32.totalorder %s83, %s86
      %p95 = scmp.eq.s32.totalorder %s17, 1
      %p96 = por %p94, %p95
      %p97 = scmp.ne.s32.totalorder %s86, %s87
      %p98 = scmp.eq.s32.totalorder %s17, 0
      %p99 = por %p97, %p98
      %p100 = scmp.ne.s32.totalorder %s86, %s87
      %p101 = scmp.eq.s32.totalorder %s18, 1
      %p102 = por %p100, %p101
      %p104 = scmp.ne.s32.totalorder %s87, %s103
      %p105 = scmp.eq.s32.totalorder %s18, 0
      %p106 = por %p104, %p105
      %s107 = ssub.s32 %s19, %s31
      %p108 = scmp.eq.s32.totalorder %s107, 0
      %s110 = sadd.s32 %s109, 1
      %s111 = scalar_select %p108, %s109, %s110
      %p114 = pneg %p108
      %p115 = scmp.eq.s32.totalorder %s12, 1
      %p116 = por %p114, %p115
      %p117 = scmp.ne.s32.totalorder %s109, %s112
      %p118 = scmp.eq.s32.totalorder %s12, 0
      %p119 = por %p117, %p118
      %p120 = scmp.ne.s32.totalorder %s109, %s112
      %p121 = scmp.eq.s32.totalorder %s17, 1
      %p122 = por %p120, %p121
      %p123 = scmp.ne.s32.totalorder %s112, %s113
      %p124 = scmp.eq.s32.totalorder %s17, 0
      %p125 = por %p123, %p124
      %p126 = scmp.ne.s32.totalorder %s112, %s113
      %p127 = scmp.eq.s32.totalorder %s18, 1
      %p128 = por %p126, %p127
      %p130 = scmp.ne.s32.totalorder %s113, %s129
      %p131 = scmp.eq.s32.totalorder %s18, 0
      %p132 = por %p130, %p131
      %p133 = scmp.le.s32.totalorder 1, %s12
      %p134 = scmp.lt.s32.totalorder %s12, 3
      %p135 = pnand %p133, %p134
      %p136 = pneg %p135
      // Predicated region
      $region9: #{tpu_custom_call.1} parent=5 // pred_check
        _
      $region10: #{tpu_custom_call.1} parent=5 // pred_check_branch
        %138 = sbr.rel (%p135) target = $region12
      $region11: #{tpu_custom_call.1} parent=5 // pred_region
        %s139 = ssub.s32 %s12, 1
        // Predicated region
        $region13: #{tpu_custom_call.1} parent=11 // pred_check
          %p140 = pneg %p50
        $region14: #{tpu_custom_call.1} parent=11 // pred_check_branch
          %142 = sbr.rel (%p140) target = $region16
        $region15: #{tpu_custom_call.1} parent=11 // pred_region
          %p143 = scmp.lt.s32.totalorder %s22, 0
          %s144 = scalar_select %p143, %s22, 0
          %s145 = smul.addr %s144, 4
          %s146 = scalar_lea.vmem %s0, %s145
        $region16: #{tpu_custom_call.1} parent=11 // pred_fallthru
          _
        // Predicated region
        $region17: #{tpu_custom_call.1} parent=11 // pred_check
          %p147 = pneg %p71
        $region18: #{tpu_custom_call.1} parent=11 // pred_check_branch
          %149 = sbr.rel (%p147) target = $region20
        $region19: #{tpu_custom_call.1} parent=11 // pred_region
          _
        $region20: #{tpu_custom_call.1} parent=11 // pred_fallthru
          _
      $region12: #{tpu_custom_call.1} parent=5 // pred_fallthru
        _
      %p150 = scmp.lt.s32.totalorder %s12, 2
      // Predicated region
      $region21: #{tpu_custom_call.1} parent=5 // pred_check
        %p151 = pneg %p150
      $region22: #{tpu_custom_call.1} parent=5 // pred_check_branch
        %153 = sbr.rel (%p151) target = $region24
      $region23: #{tpu_custom_call.1} parent=5 // pred_region
        // Predicated region
        $region25: #{tpu_custom_call.1} parent=23 // pred_check
          %p154 = pneg %p93
        $region26: #{tpu_custom_call.1} parent=23 // pred_check_branch
          %156 = sbr.rel (%p154) target = $region28
        $region27: #{tpu_custom_call.1} parent=23 // pred_region
          %s157 = sand.u32 %s83, 1
          %s158 = sand.u32 %s83, 1
          %s159 = smul.addr %s158, 16
          %s160 = scalar_lea.vmem [#allocation3], %s159
          %s161 = smul.u32 2, %s20
          %s162 = smul.u32 2, %s19
          %s163 = smul.addr %s161, 4
          %s164 = sadd.s32 %s162, %s163
          %s165 = smul.addr %s164, 4
          %s166 = scalar_lea.vmem %s2, %s165
          // Predicated region
          $region29: #{tpu_custom_call.1} parent=27 // pred_check
            _
          $region30: #{tpu_custom_call.1} parent=27 // pred_check_branch
            %168 = sbr.rel (0) target = $region32
          $region31: #{tpu_custom_call.1} parent=27 // pred_region
            // Predicated region
            $region33: #{tpu_custom_call.1} parent=31 // pred_check
              _
            $region34: #{tpu_custom_call.1} parent=31 // pred_check_branch
              %170 = sbr.rel (0) target = $region36
            $region35: #{tpu_custom_call.1} parent=31 // pred_region
              // Predicated region
              $region48: #{tpu_custom_call.1} parent=35 // pred_check
                _
              $region49: #{tpu_custom_call.1} parent=35 // pred_check_branch
                %188 = sbr.rel (0) target = $region51
              $region50: #{tpu_custom_call.1} parent=35 // pred_region
                loop: start=0, step=1, limit=1
                $region52: #{tpu_custom_call.1} parent=50 // loop_pre_header
                  _
                $region53: #{tpu_custom_call.1} parent=50 // loop_header
                  %s190 = sphi 0, %s194
                  %p191 = scmp.ge.s32.totalorder %s190, 1
                  %s195 = sphi %s166, %s166
                  %s196 = sphi %s160, %s160
                $region54: #{tpu_custom_call.1} parent=50 // loop_header_branch
                  %193 = sbr.rel (%p191) target = $region58
                $region55: #{tpu_custom_call.1} parent=50 // loop_body
                  %v197 = vld [vmem:[%s195] sm:$0xff]
                  %198 = vst [vmem:[%s196] sm:$0xff] %v197
                  %v199 = vld [vmem:[%s195 + $0x10] sm:$0xff]
                  %200 = vst [vmem:[%s196 + $0x8] sm:$0xff] %v199
                $region56: #{tpu_custom_call.1} parent=50 // loop_footer
                  %s194 = sadd.s32 1, %s190
                $region57: #{tpu_custom_call.1} parent=50 // loop_footer_branch
                  %189 = sbr.rel target = $region53
                $region58: #{tpu_custom_call.1} parent=50 // loop_exit
                  _
              $region51: #{tpu_custom_call.1} parent=35 // pred_fallthru
                _
              // Predicated region
              $region59: #{tpu_custom_call.1} parent=35 // pred_check
                _
              $region60: #{tpu_custom_call.1} parent=35 // pred_check_branch
                %202 = sbr.rel target = $region62
              $region61: #{tpu_custom_call.1} parent=35 // pred_region
                _
              $region62: #{tpu_custom_call.1} parent=35 // pred_fallthru
                _
            $region36: #{tpu_custom_call.1} parent=31 // pred_fallthru
              _
            // Predicated region
            $region37: #{tpu_custom_call.1} parent=31 // pred_check
              _
            $region38: #{tpu_custom_call.1} parent=31 // pred_check_branch
              %172 = sbr.rel target = $region40
            $region39: #{tpu_custom_call.1} parent=31 // pred_region
              %s174 = ssub.s32 256, 1
              loop: start=0, step=1, limit=1
              $region41: #{tpu_custom_call.1} parent=39 // loop_pre_header
                _
              $region42: #{tpu_custom_call.1} parent=39 // loop_header
                %s176 = sphi 0, %s180
                %p177 = scmp.ge.s32.totalorder %s176, 1
                %s181 = sphi %s166, %s166
                %s182 = sphi %s160, %s160
              $region43: #{tpu_custom_call.1} parent=39 // loop_header_branch
                %179 = sbr.rel (%p177) target = $region47
              $region44: #{tpu_custom_call.1} parent=39 // loop_body
                %v183 = vld [vmem:[%s181] sm:%s174]
                %184 = vst [vmem:[%s182] sm:%s174] %v183
                %v185 = vld [vmem:[%s181 + $0x10] sm:%s174]
                %186 = vst [vmem:[%s182 + $0x8] sm:%s174] %v185
              $region45: #{tpu_custom_call.1} parent=39 // loop_footer
                %s180 = sadd.s32 1, %s176
              $region46: #{tpu_custom_call.1} parent=39 // loop_footer_branch
                %175 = sbr.rel target = $region42
              $region47: #{tpu_custom_call.1} parent=39 // loop_exit
                _
            $region40: #{tpu_custom_call.1} parent=31 // pred_fallthru
              _
          $region32: #{tpu_custom_call.1} parent=27 // pred_fallthru
            _
          %203 = vnop
        $region28: #{tpu_custom_call.1} parent=23 // pred_fallthru
          _
      $region24: #{tpu_custom_call.1} parent=5 // pred_fallthru
        _
      %p204 = scmp.le.s32.totalorder 1, %s12
      %p205 = scmp.lt.s32.totalorder %s12, 3
      %p206 = pnand %p204, %p205
      %p207 = pneg %p206
      // Predicated region
      $region63: #{tpu_custom_call.1} parent=5 // pred_check
        _
      $region64: #{tpu_custom_call.1} parent=5 // pred_check_branch
        %209 = sbr.rel (%p206) target = $region66
      $region65: #{tpu_custom_call.1} parent=5 // pred_region
        %s210 = ssub.s32 %s12, 1
        %s211 = sand.u32 %s86, 1
        %s212 = sand.u32 %s86, 1
        %s213 = smul.addr %s212, 16
        %s214 = scalar_lea.vmem [#allocation3], %s213
        // Predicated region
        $region67: #{tpu_custom_call.1} parent=65 // pred_check
          %p215 = pneg %p99
        $region68: #{tpu_custom_call.1} parent=65 // pred_check_branch
          %217 = sbr.rel (%p215) target = $region70
        $region69: #{tpu_custom_call.1} parent=65 // pred_region
          _
        $region70: #{tpu_custom_call.1} parent=65 // pred_fallthru
          _
        %p218 = scmp.lt.s32.totalorder %s22, 0
        %s219 = scalar_select %p218, %s22, 0
        %s220 = smul.addr %s219, 4
        %s221 = scalar_lea.vmem %s0, %s220
        %p222 = pneg %p50
        %p223 = pneg %p47
        %p224 = pneg %p71
        %p225 = pneg %p68
        %s226 = sand.u32 %s86, 1
        %s227 = sand.u32 %s86, 1
        %s228 = smul.addr %s227, 16
        %s229 = scalar_lea.vmem [#allocation3], %s228
        %p230 = pneg %p99
        %p231 = pneg %p96
        %p232 = pneg %p125
        %p233 = pneg %p122
        %s234 = sand.u32 %s112, 1
        %s235 = scalar_lea.sflag [#allocation5], %s234
        %s236 = sand.u32 %s112, 1
        %s237 = smul.addr %s236, 64
        %s238 = scalar_lea.vmem [#allocation4], %s237
        %p239 = scmp.lt.s32.totalorder %s22, 0
        %s240 = scalar_select %p239, %s22, 0
        %s241 = smul.addr %s240, 4
        %s242 = scalar_lea.vmem %s0, %s241
        %s243 = smul.u32 2, %s22
        %s244 = smul.u32 2, %s21
        %s245 = smul.u32 2, %s21
        %p247 = scmp.eq.s32.totalorder %s22, 0
        // Predicated region
        $region71: #{tpu_custom_call.1} parent=65 // pred_check
          %p248 = pneg %p247
        $region72: #{tpu_custom_call.1} parent=65 // pred_check_branch
          %250 = sbr.rel (%p248) target = $region74
        $region73: #{tpu_custom_call.1} parent=65 // pred_region
          %251 = vst [vmem:[#allocation2] sm:$0xff] 0.0
          %252 = vst [vmem:[#allocation2 + $0x8] sm:$0xff] 0.0
          %253 = vst [vmem:[#allocation2 + $0x10] sm:$0xff] 0.0
          %254 = vst [vmem:[#allocation2 + $0x18] sm:$0xff] 0.0
          %255 = vst [vmem:[#allocation2 + $0x20] sm:$0xff] 0.0
          %256 = vst [vmem:[#allocation2 + $0x28] sm:$0xff] 0.0
          %257 = vst [vmem:[#allocation2 + $0x30] sm:$0xff] 0.0
          %258 = vst [vmem:[#allocation2 + $0x38] sm:$0xff] 0.0
        $region74: #{tpu_custom_call.1} parent=65 // pred_fallthru
          _
        %v259 = vld [vmem:[#allocation2] sm:$0xff]
        %v260 = vld [vmem:[#allocation2 + $0x8] sm:$0xff]
        %v261 = vld [vmem:[#allocation2 + $0x10] sm:$0xff]
        %v262 = vld [vmem:[#allocation2 + $0x18] sm:$0xff]
        %v263 = vld [vmem:[#allocation2 + $0x20] sm:$0xff]
        %v264 = vld [vmem:[#allocation2 + $0x28] sm:$0xff]
        %v265 = vld [vmem:[#allocation2 + $0x30] sm:$0xff]
        %v266 = vld [vmem:[#allocation2 + $0x38] sm:$0xff]
        %v267 = vld [vmem:[%s242] sm:$0xf]
        %v268 = vld [vmem:[%s242 + $0x4] sm:$0xf]
        %v269 = vld [vmem:[%s242 + $0x8] sm:$0xf]
        %v270 = vld [vmem:[%s242 + $0xc] sm:$0xf]
        %v271 = vld [vmem:[%s214] sm:$0xff]
        %v272 = vld [vmem:[%s214 + $0x8] sm:$0xff]
        %v277 = vunpack.c.l.b16 %v267
        %v278 = vunpack.c.l.b16 %v268
        %v279 = vunpack.c.l.b16 %v269
        %v280 = vunpack.c.l.b16 %v270
        %v281 = vpack.c.b16 %v278, %v277
        %v282 = vpack.c.b16 %v280, %v279
        %v285 = vunpack.c.l.b16 %v271
        %v286 = vunpack.c.h.b16 %v271
        %v287 = vunpack.c.l.b16 %v272
        %v288 = vunpack.c.h.b16 %v272
        %v289 = vpack.c.b16 %v287, %v285
        %v290 = vpack.c.b16 %v288, %v286
        %vm293 = vcmask 130048
        %v295 = vsel %vm293, %v281, 0
        %v298 = vsel %vm293, %v282, 0
        %300 = vmatpush.bf16.msra.mxu0 0
        %301 = vmatpush.bf16.msra.mxu0 0
        %302 = vmatpush.bf16.msra.mxu0 0
        %303 = vmatpush.bf16.msra.mxu0 0
        %304 = vmatpush.bf16.msra.mxu0 0
        %305 = vmatpush.bf16.msra.mxu0 0
        %306 = vmatpush.bf16.msra.mxu0 0
        %307 = vmatpush.bf16.msra.mxu0 %v289
        %308 = vmatmul.bf16.gmra.mxu0 %v295
        %v309 = vpop.f32.mrf.mxu0
        %v310 = vadd.f32 0.0, %v309
        %v311 = vpop.f32.mrf.mxu0
        %v312 = vadd.f32 0.0, %v311
        %313 = vmatmul.bf16.gmra.mxu0 %v298
        %v314 = vpop.f32.mrf.mxu0
        %v315 = vadd.f32 0.0, %v314
        %v316 = vpop.f32.mrf.mxu0
        %v317 = vadd.f32 0.0, %v316
        %318 = vdwg.mxu0
        %319 = vmatpush.bf16.msra.mxu0 0
        %320 = vmatpush.bf16.msra.mxu0 0
        %321 = vmatpush.bf16.msra.mxu0 0
        %322 = vmatpush.bf16.msra.mxu0 0
        %323 = vmatpush.bf16.msra.mxu0 0
        %324 = vmatpush.bf16.msra.mxu0 0
        %325 = vmatpush.bf16.msra.mxu0 0
        %326 = vmatpush.bf16.msra.mxu0 %v290
        %327 = vmatmul.bf16.gmra.mxu0 %v295
        %v328 = vpop.f32.mrf.mxu0
        %v329 = vadd.f32 0.0, %v328
        %v330 = vpop.f32.mrf.mxu0
        %v331 = vadd.f32 0.0, %v330
        %332 = vmatmul.bf16.gmra.mxu0 %v298
        %v333 = vpop.f32.mrf.mxu0
        %v334 = vadd.f32 0.0, %v333
        %v335 = vpop.f32.mrf.mxu0
        %v336 = vadd.f32 0.0, %v335
        %337 = vdwg.mxu0
        %v338 = vadd.f32 %v259, %v310
        %v339 = vadd.f32 %v260, %v329
        %v340 = vadd.f32 %v261, %v312
        %v341 = vadd.f32 %v262, %v331
        %v342 = vadd.f32 %v263, %v315
        %v343 = vadd.f32 %v264, %v334
        %v344 = vadd.f32 %v265, %v317
        %v345 = vadd.f32 %v266, %v336
        %346 = vst [vmem:[#allocation2] sm:$0xff] %v338
        %347 = vst [vmem:[#allocation2 + $0x8] sm:$0xff] %v339
        %348 = vst [vmem:[#allocation2 + $0x10] sm:$0xff] %v340
        %349 = vst [vmem:[#allocation2 + $0x18] sm:$0xff] %v341
        %350 = vst [vmem:[#allocation2 + $0x20] sm:$0xff] %v342
        %351 = vst [vmem:[#allocation2 + $0x28] sm:$0xff] %v343
        %352 = vst [vmem:[#allocation2 + $0x30] sm:$0xff] %v344
        %353 = vst [vmem:[#allocation2 + $0x38] sm:$0xff] %v345
        // Predicated region
        $region75: #{tpu_custom_call.1} parent=65 // pred_check
          %p354 = pneg %p247
        $region76: #{tpu_custom_call.1} parent=65 // pred_check_branch
          %356 = sbr.rel (%p354) target = $region78
        $region77: #{tpu_custom_call.1} parent=65 // pred_region
          %v357 = vld [vmem:[#allocation2] sm:$0xff]
          %v358 = vld [vmem:[#allocation2 + $0x8] sm:$0xff]
          %v359 = vld [vmem:[#allocation2 + $0x10] sm:$0xff]
          %v360 = vld [vmem:[#allocation2 + $0x18] sm:$0xff]
          %v361 = vld [vmem:[#allocation2 + $0x20] sm:$0xff]
          %v362 = vld [vmem:[#allocation2 + $0x28] sm:$0xff]
          %v363 = vld [vmem:[#allocation2 + $0x30] sm:$0xff]
          %v364 = vld [vmem:[#allocation2 + $0x38] sm:$0xff]
          %v365 = vld [vmem:[%s1] sm:$0xff]
          %v366 = vld [vmem:[%s1 + $0x8] sm:$0xff]
          %v367 = vld [vmem:[%s1 + $0x10] sm:$0xff]
          %v368 = vld [vmem:[%s1 + $0x18] sm:$0xff]
          %370 = vset.pattern.permute.xlu0 0
          %371 = vperm.xlu0 %370, %v365
          %v372 = vpop.permute.xlu0 %371
          %375 = vset.pattern.permute.xlu0 0
          %376 = vperm.xlu0 %375, %v366
          %v377 = vpop.permute.xlu0 %376
          %380 = vset.pattern.permute.xlu0 0
          %381 = vperm.xlu0 %380, %v367
          %v382 = vpop.permute.xlu0 %381
          %385 = vset.pattern.permute.xlu0 0
          %386 = vperm.xlu0 %385, %v368
          %v387 = vpop.permute.xlu0 %386
          %v389 = vadd.f32 %v357, %v372
          %v390 = vadd.f32 %v358, %v372
          %v391 = vadd.f32 %v359, %v377
          %v392 = vadd.f32 %v360, %v377
          %v393 = vadd.f32 %v361, %v382
          %v394 = vadd.f32 %v362, %v382
          %v395 = vadd.f32 %v363, %v387
          %v396 = vadd.f32 %v364, %v387
          %vm397 = vcmp.gt.f32.partialorder %v389, 0.0
          %vm398 = vcmp.gt.f32.partialorder %v390, 0.0
          %vm399 = vcmp.gt.f32.partialorder %v391, 0.0
          %vm400 = vcmp.gt.f32.partialorder %v392, 0.0
          %vm401 = vcmp.gt.f32.partialorder %v393, 0.0
          %vm402 = vcmp.gt.f32.partialorder %v394, 0.0
          %vm403 = vcmp.gt.f32.partialorder %v395, 0.0
          %vm404 = vcmp.gt.f32.partialorder %v396, 0.0
          %v405 = vmul.f32 %v389, 0.2
          %v406 = vmul.f32 %v390, 0.2
          %v407 = vmul.f32 %v391, 0.2
          %v408 = vmul.f32 %v392, 0.2
          %v409 = vmul.f32 %v393, 0.2
          %v410 = vmul.f32 %v394, 0.2
          %v411 = vmul.f32 %v395, 0.2
          %v412 = vmul.f32 %v396, 0.2
          %v413 = vsel %vm397, %v389, %v405
          %v414 = vsel %vm398, %v390, %v406
          %v415 = vsel %vm399, %v391, %v407
          %v416 = vsel %vm400, %v392, %v408
          %v417 = vsel %vm401, %v393, %v409
          %v418 = vsel %vm402, %v394, %v410
          %v419 = vsel %vm403, %v395, %v411
          %v420 = vsel %vm404, %v396, %v412
          %421 = vst [vmem:[%s238] sm:$0xff] %v413
          %422 = vst [vmem:[%s238 + $0x8] sm:$0xff] %v414
          %423 = vst [vmem:[%s238 + $0x10] sm:$0xff] %v415
          %424 = vst [vmem:[%s238 + $0x18] sm:$0xff] %v416
          %425 = vst [vmem:[%s238 + $0x20] sm:$0xff] %v417
          %426 = vst [vmem:[%s238 + $0x28] sm:$0xff] %v418
          %427 = vst [vmem:[%s238 + $0x30] sm:$0xff] %v419
          %428 = vst [vmem:[%s238 + $0x38] sm:$0xff] %v420
        $region78: #{tpu_custom_call.1} parent=65 // pred_fallthru
          _
        %s429 = sand.u32 %s112, 1
        %s430 = scalar_lea.sflag [#allocation5], %s429
        %s431 = sand.u32 %s112, 1
        %s432 = smul.addr %s431, 64
        %s433 = scalar_lea.vmem [#allocation4], %s432
        // Predicated region
        $region79: #{tpu_custom_call.1} parent=65 // pred_check
          %p434 = pneg %p122
        $region80: #{tpu_custom_call.1} parent=65 // pred_check_branch
          %436 = sbr.rel (%p434) target = $region82
        $region81: #{tpu_custom_call.1} parent=65 // pred_region
          %s437 = smul.u32 2, %s21
          %439 = vsyncadd %s430, 0
          %s440 = smul.addr %s437, 8
          %s441 = scalar_lea.hbm %s3, %s440
          %s442 = sshll.u32 %s433, 4
          %s443 = int_to_ptr.vmem [resolvable:$true] %s442
          %s444 = sshll.u32 %s441, 4
          %s445 = int_to_ptr.hbm [resolvable:$true] %s444
          %450 = dma.vmem_to_hbm [thread:$0]  %s443, 1024, %s445, %s430, 256, 512, 16
        $region82: #{tpu_custom_call.1} parent=65 // pred_fallthru
          _
      $region66: #{tpu_custom_call.1} parent=5 // pred_fallthru
        _
      %p451 = scmp.le.s32.totalorder 2, %s12
      // Predicated region
      $region83: #{tpu_custom_call.1} parent=5 // pred_check
        %p452 = pneg %p451
      $region84: #{tpu_custom_call.1} parent=5 // pred_check_branch
        %454 = sbr.rel (%p452) target = $region86
      $region85: #{tpu_custom_call.1} parent=5 // pred_region
        %s455 = ssub.s32 %s12, 2
        // Predicated region
        $region87: #{tpu_custom_call.1} parent=85 // pred_check
          %p456 = pneg %p128
        $region88: #{tpu_custom_call.1} parent=85 // pred_check_branch
          %458 = sbr.rel (%p456) target = $region90
        $region89: #{tpu_custom_call.1} parent=85 // pred_region
          %s459 = sand.u32 %s113, 1
          %s460 = scalar_lea.sflag [#allocation5], %s459
          %s461 = sand.u32 %s113, 1
          %s462 = smul.addr %s461, 64
          %s463 = scalar_lea.vmem [#allocation4], %s462
          %465 = dma.done %s460, 1024
        $region90: #{tpu_custom_call.1} parent=85 // pred_fallthru
          _
      $region86: #{tpu_custom_call.1} parent=5 // pred_fallthru
        _
    $region6: #{tpu_custom_call.1} parent=1 // loop_footer
      %s16 = sadd.s32 1, %s12
    $region7: #{tpu_custom_call.1} parent=1 // loop_footer_branch
      %11 = sbr.rel target = $region3
    $region8: #{tpu_custom_call.1} parent=1 // loop_exit
      _
    %466 = vsyncpa [#allocation5], 1
    %s467 = scalar_lea.sflag [#allocation5], 1
    %468 = vsyncpa %s467, 1

</llo_original>
